<compile_context>
chip_gen: v7x
topology: tpu7x:2x2x1
jax: 0.10.0
libtpu: 0.0.40
codegen_flags: <defaults>
</compile_context>

<pallas_src>
import functools

import jax
import jax.numpy as jnp
from jax.experimental import pallas as pl
from jax.experimental.pallas import tpu as pltpu


def _tv_loss_kernel(x_ref, o_ref, *, coeff_h, coeff_w):
    """x_ref: (tile_bc, H, W) tile of the (B*C, H, W) input.
       o_ref: (1, 1) accumulator, resident across the whole grid."""

    @pl.when(pl.program_id(0) == 0)
    def _():
        o_ref[...] = jnp.zeros_like(o_ref)

    img = x_ref[...].astype(jnp.float32)            # (tile_bc, H, W)
    dh = img[:, 1:, :] - img[:, :-1, :]             # (tile_bc, H-1, W)
    dw = img[:, :, 1:] - img[:, :, :-1]             # (tile_bc, H,   W-1)

    h_part = jnp.sum(dh * dh)                       # scalar partial sums
    w_part = jnp.sum(dw * dw)

    o_ref[...] += coeff_h * h_part + coeff_w * w_part


def _pick_tile(bc, bytes_per_image, budget_bytes):
    """Largest divisor of bc whose block (x2 for double buffering) fits the budget."""
    max_tile = max(1, budget_bytes // max(1, 2 * bytes_per_image))
    tile = 1
    for d in range(1, bc + 1):
        if bc % d == 0 and d <= max_tile:
            tile = d
    return tile


@functools.partial(jax.jit, static_argnames=("weight", "tile_bc"))
def tv_loss(x, *, weight=1.0, tile_bc=None):
    """Total-variation loss of an NCHW tensor, matching the PyTorch TVLoss module."""
    assert x.ndim == 4, "expected NCHW input"
    b, c, h, w = x.shape
    assert h >= 2 and w >= 2, "TV loss needs H >= 2 and W >= 2"

    bc = b * c
    xf = x.reshape(bc, h, w)

    if tile_bc is None:
        bytes_per_image = h * w * jnp.dtype(x.dtype).itemsize
        tile_bc = _pick_tile(bc, bytes_per_image, budget_bytes=4 * 1024 * 1024)
    assert bc % tile_bc == 0, "tile_bc must divide B*C"

    # Fold the normalization (counts, batch size, weight, factor 2) into
    # compile-time coefficients so the kernel only accumulates.
    count_h = c * (h - 1) * w
    count_w = c * h * (w - 1)
    coeff_h = float(weight) * 2.0 / (float(b) * float(count_h))
    coeff_w = float(weight) * 2.0 / (float(b) * float(count_w))

    grid = (bc // tile_bc,)

    out = pl.pallas_call(
        functools.partial(_tv_loss_kernel, coeff_h=coeff_h, coeff_w=coeff_w),
        out_shape=jax.ShapeDtypeStruct((1, 1), jnp.float32),
        grid_spec=pltpu.PrefetchScalarGridSpec(
            num_scalar_prefetch=0,
            grid=grid,
            in_specs=[pl.BlockSpec((tile_bc, h, w), lambda i: (i, 0, 0))],
            out_specs=pl.BlockSpec((1, 1), lambda i: (0, 0)),
        ),
        compiler_params=pltpu.CompilerParams(
            # Output accumulates across the grid axis -> must be "arbitrary".
            dimension_semantics=("arbitrary",),
        ),
    )(xf)
    return out[0, 0]


def tv_loss_reference(x, weight=1.0):
    """Pure-JAX reference matching the PyTorch module."""
    b, c, h, w = x.shape
    count_h = c * (h - 1) * w
    count_w = c * h * (w - 1)
    h_tv = jnp.sum(jnp.square(x[:, :, 1:, :] - x[:, :, :-1, :]))
    w_tv = jnp.sum(jnp.square(x[:, :, :, 1:] - x[:, :, :, :-1]))
    return weight * 2.0 * (h_tv / count_h + w_tv / count_w) / b


if __name__ == "__main__":
    key = jax.random.PRNGKey(0)
    # Small NCHW example consistent with the module: batch=2, channels=4, 16x16 spatial.
    x = jax.random.normal(key, (2, 4, 16, 16), jnp.float32)

    out = tv_loss(x, weight=1.0)
    out = jax.block_until_ready(out)

    ref = tv_loss_reference(x, weight=1.0)
    assert out.shape == ()
    assert jnp.allclose(out, ref, atol=1e-5, rtol=1e-5), (out, ref)

    print("KERNEL_OK")
</pallas_src>

<mosaic_0001>
module attributes {stable_mosaic.version = 11 : i64} {
  func.func @_tv_loss_kernel(%arg0: i32, %arg1: memref<8x16x16xf32, #tpu.memory_space<vmem>>, %arg2: memref<1x1xf32, #tpu.memory_space<vmem>>) attributes {dimension_semantics = [#tpu.dimension_semantics<arbitrary>], iteration_bounds = array<i64: 1>, scalar_prefetch = 0 : i64, scratch_operands = 0 : i64, tpu.core_type = #tpu.core_type<tc>, window_params = [{transform_indices = @transform_0, window_bounds = array<i64: 8, 16, 16>}, {pipeline_mode = #tpu.pipeline_mode<synchronous>, transform_indices = @transform_1, window_bounds = array<i64: 1, 1>}]} {
    %c0_i32 = arith.constant 0 : i32
    %0 = arith.cmpi eq, %arg0, %c0_i32 : i32
    %1 = arith.extui %0 : i1 to i32
    %c0_i32_0 = arith.constant 0 : i32
    %2 = arith.cmpi ne, %1, %c0_i32_0 : i32
    scf.if %2 {
      %cst_10 = arith.constant 0.000000e+00 : f32
      %27 = vector.broadcast %cst_10 : f32 to vector<1x1xf32>
      %c0_11 = arith.constant 0 : index
      %c0_12 = arith.constant 0 : index
      %28 = vector.load %arg2[%c0_11, %c0_12] : memref<1x1xf32, #tpu.memory_space<vmem>>, vector<1x1xf32>
      tpu.vector_store %arg2[%c0_11, %c0_12], %27 {strides = array<i32>} : memref<1x1xf32, #tpu.memory_space<vmem>>, vector<1x1xf32>,
    } else {
    }
    %c0 = arith.constant 0 : index
    %c0_1 = arith.constant 0 : index
    %c0_2 = arith.constant 0 : index
    %3 = vector.load %arg1[%c0, %c0_1, %c0_2] : memref<8x16x16xf32, #tpu.memory_space<vmem>>, vector<8x16x16xf32>
    %4 = vector.extract_strided_slice %3 {offsets = [0, 1, 0], sizes = [8, 15, 16], strides = [1, 1, 1]} : vector<8x16x16xf32> to vector<8x15x16xf32>
    %5 = vector.extract_strided_slice %3 {offsets = [0, 0, 0], sizes = [8, 15, 16], strides = [1, 1, 1]} : vector<8x16x16xf32> to vector<8x15x16xf32>
    %6 = arith.subf %4, %5 : vector<8x15x16xf32>
    %7 = vector.extract_strided_slice %3 {offsets = [0, 0, 1], sizes = [8, 16, 15], strides = [1, 1, 1]} : vector<8x16x16xf32> to vector<8x16x15xf32>
    %8 = vector.extract_strided_slice %3 {offsets = [0, 0, 0], sizes = [8, 16, 15], strides = [1, 1, 1]} : vector<8x16x16xf32> to vector<8x16x15xf32>
    %9 = arith.subf %7, %8 : vector<8x16x15xf32>
    %10 = arith.mulf %6, %6 : vector<8x15x16xf32>
    %11 = vector.shape_cast %10 : vector<8x15x16xf32> to vector<1x8x15x16xf32>
    %cst = arith.constant dense<0.000000e+00> : vector<1xf32>
    %12 = vector.multi_reduction <add>, %11, %cst [1, 2, 3] : vector<1x8x15x16xf32> to vector<1xf32>
    %13 = vector.shape_cast %12 : vector<1xf32> to vector<1x1x1x1xf32>
    %14 = vector.extract %13[0, 0, 0, 0] : f32 from vector<1x1x1x1xf32>
    %15 = arith.mulf %9, %9 : vector<8x16x15xf32>
    %16 = vector.shape_cast %15 : vector<8x16x15xf32> to vector<1x8x16x15xf32>
    %cst_3 = arith.constant dense<0.000000e+00> : vector<1xf32>
    %17 = vector.multi_reduction <add>, %16, %cst_3 [1, 2, 3] : vector<1x8x16x15xf32> to vector<1xf32>
    %18 = vector.shape_cast %17 : vector<1xf32> to vector<1x1x1x1xf32>
    %19 = vector.extract %18[0, 0, 0, 0] : f32 from vector<1x1x1x1xf32>
    %c0_4 = arith.constant 0 : index
    %c0_5 = arith.constant 0 : index
    %20 = vector.load %arg2[%c0_4, %c0_5] : memref<1x1xf32, #tpu.memory_space<vmem>>, vector<1x1xf32>
    %cst_6 = arith.constant 0.00104166672 : f32
    %21 = arith.mulf %cst_6, %14 : f32
    %cst_7 = arith.constant 0.00104166672 : f32
    %22 = arith.mulf %cst_7, %19 : f32
    %23 = arith.addf %21, %22 : f32
    %24 = vector.broadcast %23 : f32 to vector<1x1xf32>
    %25 = arith.addf %20, %24 : vector<1x1xf32>
    %c0_8 = arith.constant 0 : index
    %c0_9 = arith.constant 0 : index
    %26 = vector.load %arg2[%c0_8, %c0_9] : memref<1x1xf32, #tpu.memory_space<vmem>>, vector<1x1xf32>
    tpu.vector_store %arg2[%c0_8, %c0_9], %25 {strides = array<i32>} : memref<1x1xf32, #tpu.memory_space<vmem>>, vector<1x1xf32>,
    return
  }
  func.func @transform_0(%arg0: i32) -> (i32, i32, i32) {
    %c0_i32 = arith.constant 0 : i32
    %c0_i32_0 = arith.constant 0 : i32
    %c0_i32_1 = arith.constant 0 : i32
    return %arg0, %c0_i32, %c0_i32_0 : i32, i32, i32
  }
  func.func @transform_1(%arg0: i32) -> (i32, i32) {
    %c0_i32 = arith.constant 0 : i32
    %c0_i32_0 = arith.constant 0 : i32
    %c0_i32_1 = arith.constant 0 : i32
    return %c0_i32, %c0_i32_0 : i32, i32
  }
}

</mosaic_0001>

<llo_original>
// kernel: tv_loss.1
$region0: #{tv_loss.1}
  #allocation0 [shape = 'u32[]', space=smem, size = 0x4, offset = 0x4, fixed_abs, tag = 'smem constant byte address 0x4 - core index']
  #allocation1 [shape = 'u32[144,128]{1,0:T(1,128)}', space=vmem, size = 0x12000, scoped, tag = 'internal scratch']
  %s0 = inlined_call_operand.hbm [shape: f32[8,16,16], index: 0, kind: input, shape index: {}]
  %s1 = inlined_call_operand.hbm [shape: f32[1,1], index: 1, kind: output, shape index: {}]
  %s2 = sld [smem:[#allocation0]]
  $region22: #{tv_loss.1} parent=0
    _
  %s4 = ssub.s32 1, %s2
  %s5 = scalar_select 0, %s4, %s2
  $region1: #{tv_loss.1} parent=0
    #allocation2 [shape = 'u8[65536]{0}', space=vmem, size = 0x10000, scoped, tag = 'input window, operand 0, single buffered']
    #allocation3 [shape = 's32[1]{0}', space=sflag, size = 0x4, scoped, tag = 'scoped memory for tv_loss.1']
    #allocation4 [shape = 's32[1]{0}', space=sflag, size = 0x4, scoped, tag = 'scoped memory for tv_loss.1']
    #allocation5 [shape = 'u8[512]{0}', space=vmem, size = 0x400, scoped, tag = 'output window, operand 0, single buffered']
    %6 = vsyncpa [#allocation3], 0
    %7 = vsyncpa [#allocation4], 0
    // Predicated region
    $region2: #{tv_loss.1} parent=1 // pred_check
      _
    $region3: #{tv_loss.1} parent=1 // pred_check_branch
      %9 = sbr.rel (0) target = $region5
    $region4: #{tv_loss.1} parent=1 // pred_region
      %s11 = ssub.s32 2048, 2048
      %12 = vsyncadd [#allocation3], %s11
      %s13 = sshll.u32 [#allocation2], 4
      %s14 = int_to_ptr.vmem [resolvable:$true] %s13
      %19 = dma.hbm_to_vmem [thread:$0]  %s0, 2048, %s14, [#allocation3], 128, 128, 8
    $region5: #{tv_loss.1} parent=1 // pred_fallthru
      _
    // Predicated region
    $region6: #{tv_loss.1} parent=1 // pred_check
      _
    $region7: #{tv_loss.1} parent=1 // pred_check_branch
      %21 = sbr.rel (0) target = $region9
    $region8: #{tv_loss.1} parent=1 // pred_region
      %22 = dma.done [#allocation3], 2048
    $region9: #{tv_loss.1} parent=1 // pred_fallthru
      _
    %p23 = scmp.eq.s32.totalorder 0, 0
    // Predicated region
    $region10: #{tv_loss.1} parent=1 // pred_check
      %p24 = pneg %p23
    $region11: #{tv_loss.1} parent=1 // pred_check_branch
      %26 = sbr.rel (%p24) target = $region13
    $region12: #{tv_loss.1} parent=1 // pred_region
      %vm27 = vcmask 0
      %28 = vst.msk [vmem:[#allocation5] sm:$0x1] %vm27, 0.0
    $region13: #{tv_loss.1} parent=1 // pred_fallthru
      _
    %v29 = vld [vmem:[#allocation2] sm:$0xff]
    %v30 = vld [vmem:[#allocation2 + $0x8] sm:$0xff]
    %v31 = vld [vmem:[#allocation2 + $0x10] sm:$0xff]
    %v32 = vld [vmem:[#allocation2 + $0x18] sm:$0xff]
    %v33 = vld [vmem:[#allocation2 + $0x20] sm:$0xff]
    %v34 = vld [vmem:[#allocation2 + $0x28] sm:$0xff]
    %v35 = vld [vmem:[#allocation2 + $0x30] sm:$0xff]
    %v36 = vld [vmem:[#allocation2 + $0x38] sm:$0xff]
    %v37 = vld [vmem:[#allocation2 + $0x40] sm:$0xff]
    %v38 = vld [vmem:[#allocation2 + $0x48] sm:$0xff]
    %v39 = vld [vmem:[#allocation2 + $0x50] sm:$0xff]
    %v40 = vld [vmem:[#allocation2 + $0x58] sm:$0xff]
    %v41 = vld [vmem:[#allocation2 + $0x60] sm:$0xff]
    %v42 = vld [vmem:[#allocation2 + $0x68] sm:$0xff]
    %v43 = vld [vmem:[#allocation2 + $0x70] sm:$0xff]
    %v44 = vld [vmem:[#allocation2 + $0x78] sm:$0xff]
    %vm61 = vcmask 1040384
    %v62 = vrot.slane %v29, 7
    %v63 = vrot.slane %v30, 7
    %v64 = vsel %vm61, %v62, %v63
    %v65 = vrot.slane %v31, 7
    %v66 = vrot.slane %v32, 7
    %v67 = vsel %vm61, %v65, %v66
    %v68 = vrot.slane %v33, 7
    %v69 = vrot.slane %v34, 7
    %v70 = vsel %vm61, %v68, %v69
    %v71 = vrot.slane %v35, 7
    %v72 = vrot.slane %v36, 7
    %v73 = vsel %vm61, %v71, %v72
    %v74 = vrot.slane %v37, 7
    %v75 = vrot.slane %v38, 7
    %v76 = vsel %vm61, %v74, %v75
    %v77 = vrot.slane %v39, 7
    %v78 = vrot.slane %v40, 7
    %v79 = vsel %vm61, %v77, %v78
    %v80 = vrot.slane %v41, 7
    %v81 = vrot.slane %v42, 7
    %v82 = vsel %vm61, %v80, %v81
    %v83 = vrot.slane %v43, 7
    %v84 = vrot.slane %v44, 7
    %v85 = vsel %vm61, %v83, %v84
    %v102 = vsub.f32 %v29, %v62
    %v103 = vsub.f32 %v30, %v64
    %v104 = vsub.f32 %v31, %v65
    %v105 = vsub.f32 %v32, %v67
    %v106 = vsub.f32 %v33, %v68
    %v107 = vsub.f32 %v34, %v70
    %v108 = vsub.f32 %v35, %v71
    %v109 = vsub.f32 %v36, %v73
    %v110 = vsub.f32 %v37, %v74
    %v111 = vsub.f32 %v38, %v76
    %v112 = vsub.f32 %v39, %v77
    %v113 = vsub.f32 %v40, %v79
    %v114 = vsub.f32 %v41, %v80
    %v115 = vsub.f32 %v42, %v82
    %v116 = vsub.f32 %v43, %v83
    %v117 = vsub.f32 %v44, %v85
    %118 = vrot.lane.b32.xlu0 %v29, 1
    %v119 = vpop.permute.xlu0 %118
    %120 = vrot.lane.b32.xlu0 %v30, 1
    %v121 = vpop.permute.xlu0 %120
    %122 = vrot.lane.b32.xlu0 %v31, 1
    %v123 = vpop.permute.xlu0 %122
    %124 = vrot.lane.b32.xlu0 %v32, 1
    %v125 = vpop.permute.xlu0 %124
    %126 = vrot.lane.b32.xlu0 %v33, 1
    %v127 = vpop.permute.xlu0 %126
    %128 = vrot.lane.b32.xlu0 %v34, 1
    %v129 = vpop.permute.xlu0 %128
    %130 = vrot.lane.b32.xlu0 %v35, 1
    %v131 = vpop.permute.xlu0 %130
    %132 = vrot.lane.b32.xlu0 %v36, 1
    %v133 = vpop.permute.xlu0 %132
    %134 = vrot.lane.b32.xlu0 %v37, 1
    %v135 = vpop.permute.xlu0 %134
    %136 = vrot.lane.b32.xlu0 %v38, 1
    %v137 = vpop.permute.xlu0 %136
    %138 = vrot.lane.b32.xlu0 %v39, 1
    %v139 = vpop.permute.xlu0 %138
    %140 = vrot.lane.b32.xlu0 %v40, 1
    %v141 = vpop.permute.xlu0 %140
    %142 = vrot.lane.b32.xlu0 %v41, 1
    %v143 = vpop.permute.xlu0 %142
    %144 = vrot.lane.b32.xlu0 %v42, 1
    %v145 = vpop.permute.xlu0 %144
    %146 = vrot.lane.b32.xlu0 %v43, 1
    %v147 = vpop.permute.xlu0 %146
    %148 = vrot.lane.b32.xlu0 %v44, 1
    %v149 = vpop.permute.xlu0 %148
    %v166 = vsub.f32 %v29, %v119
    %v167 = vsub.f32 %v30, %v121
    %v168 = vsub.f32 %v31, %v123
    %v169 = vsub.f32 %v32, %v125
    %v170 = vsub.f32 %v33, %v127
    %v171 = vsub.f32 %v34, %v129
    %v172 = vsub.f32 %v35, %v131
    %v173 = vsub.f32 %v36, %v133
    %v174 = vsub.f32 %v37, %v135
    %v175 = vsub.f32 %v38, %v137
    %v176 = vsub.f32 %v39, %v139
    %v177 = vsub.f32 %v40, %v141
    %v178 = vsub.f32 %v41, %v143
    %v179 = vsub.f32 %v42, %v145
    %v180 = vsub.f32 %v43, %v147
    %v181 = vsub.f32 %v44, %v149
    %v182 = vmul.f32 %v102, %v102
    %v183 = vmul.f32 %v103, %v103
    %v184 = vmul.f32 %v104, %v104
    %v185 = vmul.f32 %v105, %v105
    %v186 = vmul.f32 %v106, %v106
    %v187 = vmul.f32 %v107, %v107
    %v188 = vmul.f32 %v108, %v108
    %v189 = vmul.f32 %v109, %v109
    %v190 = vmul.f32 %v110, %v110
    %v191 = vmul.f32 %v111, %v111
    %v192 = vmul.f32 %v112, %v112
    %v193 = vmul.f32 %v113, %v113
    %v194 = vmul.f32 %v114, %v114
    %v195 = vmul.f32 %v115, %v115
    %v196 = vmul.f32 %v116, %v116
    %v197 = vmul.f32 %v117, %v117
    %vm214 = vcmask 1046528
    %v215 = vrot.slane %v182, 1
    %v216 = vrot.slane %v183, 1
    %v217 = vsel %vm214, %v215, %v216
    %v218 = vrot.slane %v184, 1
    %v219 = vrot.slane %v185, 1
    %v220 = vsel %vm214, %v218, %v219
    %v221 = vrot.slane %v186, 1
    %v222 = vrot.slane %v187, 1
    %v223 = vsel %vm214, %v221, %v222
    %v224 = vrot.slane %v188, 1
    %v225 = vrot.slane %v189, 1
    %v226 = vsel %vm214, %v224, %v225
    %v227 = vrot.slane %v190, 1
    %v228 = vrot.slane %v191, 1
    %v229 = vsel %vm214, %v227, %v228
    %v230 = vrot.slane %v192, 1
    %v231 = vrot.slane %v193, 1
    %v232 = vsel %vm214, %v230, %v231
    %v233 = vrot.slane %v194, 1
    %v234 = vrot.slane %v195, 1
    %v235 = vsel %vm214, %v233, %v234
    %v236 = vrot.slane %v196, 1
    %v237 = vrot.slane %v197, 1
    %v238 = vsel %vm214, %v236, %v237
    %vm255 = vcmask 130048
    %v256 = vsel %vm255, %v217, 0.0
    %vm257 = vcmask 129024
    %v258 = vsel %vm257, %v216, 0.0
    %v259 = vadd.f32 %v256, %v258
    %v260 = vsel %vm255, %v220, 0.0
    %v261 = vadd.f32 %v259, %v260
    %v262 = vsel %vm257, %v219, 0.0
    %v263 = vadd.f32 %v261, %v262
    %v264 = vsel %vm255, %v223, 0.0
    %v265 = vadd.f32 %v263, %v264
    %v266 = vsel %vm257, %v222, 0.0
    %v267 = vadd.f32 %v265, %v266
    %v268 = vsel %vm255, %v226, 0.0
    %v269 = vadd.f32 %v267, %v268
    %v270 = vsel %vm257, %v225, 0.0
    %v271 = vadd.f32 %v269, %v270
    %v272 = vsel %vm255, %v229, 0.0
    %v273 = vadd.f32 %v271, %v272
    %v274 = vsel %vm257, %v228, 0.0
    %v275 = vadd.f32 %v273, %v274
    %v276 = vsel %vm255, %v232, 0.0
    %v277 = vadd.f32 %v275, %v276
    %v278 = vsel %vm257, %v231, 0.0
    %v279 = vadd.f32 %v277, %v278
    %v280 = vsel %vm255, %v235, 0.0
    %v281 = vadd.f32 %v279, %v280
    %v282 = vsel %vm257, %v234, 0.0
    %v283 = vadd.f32 %v281, %v282
    %v284 = vsel %vm255, %v238, 0.0
    %v285 = vadd.f32 %v283, %v284
    %v286 = vsel %vm257, %v237, 0.0
    %v287 = vadd.f32 %v285, %v286
    %288 = vadd.xlane.f32.xlu0 %v287
    %v289 = vpop.xlane.xlu0 %288
    %v290 = vrot.slane %v289, 4
    %v291 = vadd.f32 %v289, %v290
    %v292 = vrot.slane %v291, 2
    %v293 = vadd.f32 %v291, %v292
    %v294 = vrot.slane %v293, 1
    %v295 = vadd.f32 %v293, %v294
    %s296 = vtos %v295
    %v297 = vmul.f32 %v166, %v166
    %v298 = vmul.f32 %v167, %v167
    %v299 = vmul.f32 %v168, %v168
    %v300 = vmul.f32 %v169, %v169
    %v301 = vmul.f32 %v170, %v170
    %v302 = vmul.f32 %v171, %v171
    %v303 = vmul.f32 %v172, %v172
    %v304 = vmul.f32 %v173, %v173
    %v305 = vmul.f32 %v174, %v174
    %v306 = vmul.f32 %v175, %v175
    %v307 = vmul.f32 %v176, %v176
    %v308 = vmul.f32 %v177, %v177
    %v309 = vmul.f32 %v178, %v178
    %v310 = vmul.f32 %v179, %v179
    %v311 = vmul.f32 %v180, %v180
    %v312 = vmul.f32 %v181, %v181
    %329 = vrot.lane.b32.xlu0 %v297, 127
    %v330 = vpop.permute.xlu0 %329
    %331 = vrot.lane.b32.xlu0 %v298, 127
    %v332 = vpop.permute.xlu0 %331
    %333 = vrot.lane.b32.xlu0 %v299, 127
    %v334 = vpop.permute.xlu0 %333
    %335 = vrot.lane.b32.xlu0 %v300, 127
    %v336 = vpop.permute.xlu0 %335
    %337 = vrot.lane.b32.xlu0 %v301, 127
    %v338 = vpop.permute.xlu0 %337
    %339 = vrot.lane.b32.xlu0 %v302, 127
    %v340 = vpop.permute.xlu0 %339
    %341 = vrot.lane.b32.xlu0 %v303, 127
    %v342 = vpop.permute.xlu0 %341
    %343 = vrot.lane.b32.xlu0 %v304, 127
    %v344 = vpop.permute.xlu0 %343
    %345 = vrot.lane.b32.xlu0 %v305, 127
    %v346 = vpop.permute.xlu0 %345
    %347 = vrot.lane.b32.xlu0 %v306, 127
    %v348 = vpop.permute.xlu0 %347
    %349 = vrot.lane.b32.xlu0 %v307, 127
    %v350 = vpop.permute.xlu0 %349
    %351 = vrot.lane.b32.xlu0 %v308, 127
    %v352 = vpop.permute.xlu0 %351
    %353 = vrot.lane.b32.xlu0 %v309, 127
    %v354 = vpop.permute.xlu0 %353
    %355 = vrot.lane.b32.xlu0 %v310, 127
    %v356 = vpop.permute.xlu0 %355
    %357 = vrot.lane.b32.xlu0 %v311, 127
    %v358 = vpop.permute.xlu0 %357
    %359 = vrot.lane.b32.xlu0 %v312, 127
    %v360 = vpop.permute.xlu0 %359
    %vm377 = vcmask 121856
    %v378 = vsel %vm377, %v330, 0.0
    %v379 = vsel %vm377, %v332, 0.0
    %v380 = vadd.f32 %v378, %v379
    %v381 = vsel %vm377, %v334, 0.0
    %v382 = vadd.f32 %v380, %v381
    %v383 = vsel %vm377, %v336, 0.0
    %v384 = vadd.f32 %v382, %v383
    %v385 = vsel %vm377, %v338, 0.0
    %v386 = vadd.f32 %v384, %v385
    %v387 = vsel %vm377, %v340, 0.0
    %v388 = vadd.f32 %v386, %v387
    %v389 = vsel %vm377, %v342, 0.0
    %v390 = vadd.f32 %v388, %v389
    %v391 = vsel %vm377, %v344, 0.0
    %v392 = vadd.f32 %v390, %v391
    %v393 = vsel %vm377, %v346, 0.0
    %v394 = vadd.f32 %v392, %v393
    %v395 = vsel %vm377, %v348, 0.0
    %v396 = vadd.f32 %v394, %v395
    %v397 = vsel %vm377, %v350, 0.0
    %v398 = vadd.f32 %v396, %v397
    %v399 = vsel %vm377, %v352, 0.0
    %v400 = vadd.f32 %v398, %v399
    %v401 = vsel %vm377, %v354, 0.0
    %v402 = vadd.f32 %v400, %v401
    %v403 = vsel %vm377, %v356, 0.0
    %v404 = vadd.f32 %v402, %v403
    %v405 = vsel %vm377, %v358, 0.0
    %v406 = vadd.f32 %v404, %v405
    %v407 = vsel %vm377, %v360, 0.0
    %v408 = vadd.f32 %v406, %v407
    %409 = vadd.xlane.f32.xlu0 %v408
    %v410 = vpop.xlane.xlu0 %409
    %v411 = vrot.slane %v410, 4
    %v412 = vadd.f32 %v410, %v411
    %v413 = vrot.slane %v412, 2
    %v414 = vadd.f32 %v412, %v413
    %v415 = vrot.slane %v414, 1
    %v416 = vadd.f32 %v414, %v415
    %s417 = vtos %v416
    %v418 = vld [vmem:[#allocation5] sm:$0x1]
    %s419 = smul.f32 %s296, 0.0010416667
    %s420 = smul.f32 %s417, 0.0010416667
    %s421 = sadd.f32 %s419, %s420
    %v422 = vstv %s421
    %v423 = vadd.f32 %v418, %v422
    %vm424 = vcmask 0
    %425 = vst.msk [vmem:[#allocation5] sm:$0x1] %vm424, %v423
    // Predicated region
    $region14: #{tv_loss.1} parent=1 // pred_check
      _
    $region15: #{tv_loss.1} parent=1 // pred_check_branch
      %427 = sbr.rel (0) target = $region17
    $region16: #{tv_loss.1} parent=1 // pred_region
      %s429 = ssub.s32 16, 16
      %430 = vsyncadd [#allocation4], %s429
      %s432 = sshll.u32 [#allocation5], 4
      %s433 = int_to_ptr.vmem [resolvable:$true] %s432
      %435 = dma.vmem_to_hbm [thread:$0]  %s433, 16, %s1, [#allocation4]
    $region17: #{tv_loss.1} parent=1 // pred_fallthru
      _
    // Predicated region
    $region18: #{tv_loss.1} parent=1 // pred_check
      _
    $region19: #{tv_loss.1} parent=1 // pred_check_branch
      %437 = sbr.rel (0) target = $region21
    $region20: #{tv_loss.1} parent=1 // pred_region
      %438 = dma.done [#allocation4], 16
    $region21: #{tv_loss.1} parent=1 // pred_fallthru
      _
    %439 = vsyncpa [#allocation3], 1
    %440 = vsyncpa [#allocation4], 1

</llo_original>
